<compile_context>
chip_gen: v6e
topology: v6e:2x2x1
jax: 0.10.0
libtpu: 0.0.40
codegen_flags: <defaults>
</compile_context>

<pallas_src>
import jax
import jax.numpy as jnp
from jax.experimental import pallas as pl
from jax.experimental.pallas import tpu as pltpu


def projection_head_kernel(x_ref, w1_ref, b1_ref, w2_ref, b2_ref,
                           gamma_ref, beta_ref, o_ref):
    # One-time loads per grid step; params are (1, P) and broadcast over sublanes.
    w1 = w1_ref[...]
    w2 = w2_ref[...]
    b1 = b1_ref[...].astype(jnp.float32)
    b2 = b2_ref[...].astype(jnp.float32)
    gamma = gamma_ref[...].astype(jnp.float32)
    beta = beta_ref[...].astype(jnp.float32)

    # projection = Linear(E -> P); matmul inputs in the weight dtype (f32 or
    # bf16), accumulation always in f32 on the MXU.
    x = x_ref[...].astype(w1.dtype)
    projected = jnp.dot(x, w1, preferred_element_type=jnp.float32) + b1

    # LeakyReLU (default negative_slope = 0.01)
    h = jnp.where(projected > 0, projected, 0.01 * projected)

    # fc = Linear(P -> P)
    y = jnp.dot(h.astype(w2.dtype), w2, preferred_element_type=jnp.float32) + b2

    # Dropout: identity at inference time.
    # TODO(synk): training-mode dropout (pltpu.prng_random_bits mask) not emitted here.

    # Residual + LayerNorm (eps = 1e-5, affine), all in f32.
    z = y + projected
    mean = jnp.mean(z, axis=-1, keepdims=True)
    centered = z - mean
    var = jnp.mean(centered * centered, axis=-1, keepdims=True)
    inv = jax.lax.rsqrt(var + 1e-5)          # single EUP rsqrt, no divide
    normed = centered * inv
    o_ref[...] = (normed * gamma + beta).astype(o_ref.dtype)


def _round_up(a, m):
    return (a + m - 1) // m * m


def projection_head(x, w1, b1, w2, b2, gamma, beta, *,
                    tb_max=512, matmul_dtype=None):
    """Pallas ProjectionHead forward.

    x:  (B, E)    w1: (E, P)    b1: (P,)
    w2: (P, P)    b2: (P,)      gamma/beta: (P,)
    matmul_dtype: e.g. jnp.bfloat16 to run the MXU in bf16 (f32 accumulation).
    """
    B, E = x.shape
    P = w1.shape[1]

    if matmul_dtype is not None:
        w1 = w1.astype(matmul_dtype)
        w2 = w2.astype(matmul_dtype)

    # Batch tile: as large as reasonable, multiple of 8 sublanes.
    TB = int(min(tb_max, _round_up(B, 8)))
    TB = max(8, _round_up(TB, 8))
    B_pad = _round_up(B, TB)
    if B_pad != B:
        x = jnp.pad(x, ((0, B_pad - B), (0, 0)))

    # Biases / LN params as (1, P) for lane-aligned broadcasting.
    b1_2d = b1.reshape(1, P)
    b2_2d = b2.reshape(1, P)
    gamma_2d = gamma.reshape(1, P)
    beta_2d = beta.reshape(1, P)

    grid = (B_pad // TB,)

    # VMEM budget: double-buffered x/out tiles + resident weights/params
    # + f32 intermediates; 2x headroom, capped at 64 MiB (v7x physical).
    x_sz = jnp.dtype(x.dtype).itemsize
    w_sz = jnp.dtype(w1.dtype).itemsize
    vmem_need = (2 * TB * (E + P) * x_sz            # double-buffered in/out tiles
                 + (E * P + P * P) * w_sz           # resident weights
                 + 4 * P * 4                        # biases + LN params
                 + 4 * TB * P * 4)                  # f32 intermediates headroom
    vmem_limit = int(min(64 << 20, max(8 << 20, 2 * vmem_need)))

    out = pl.pallas_call(
        projection_head_kernel,
        out_shape=jax.ShapeDtypeStruct((B_pad, P), x.dtype),
        grid_spec=pltpu.PrefetchScalarGridSpec(
            num_scalar_prefetch=0,
            grid=grid,
            in_specs=[
                pl.BlockSpec((TB, E), lambda i: (i, 0)),   # x: tiled over batch
                pl.BlockSpec((E, P), lambda i: (0, 0)),    # w1: VMEM-resident
                pl.BlockSpec((1, P), lambda i: (0, 0)),    # b1
                pl.BlockSpec((P, P), lambda i: (0, 0)),    # w2: VMEM-resident
                pl.BlockSpec((1, P), lambda i: (0, 0)),    # b2
                pl.BlockSpec((1, P), lambda i: (0, 0)),    # gamma
                pl.BlockSpec((1, P), lambda i: (0, 0)),    # beta
            ],
            out_specs=pl.BlockSpec((TB, P), lambda i: (i, 0)),
        ),
        compiler_params=pltpu.CompilerParams(
            dimension_semantics=("parallel",),
            vmem_limit_bytes=vmem_limit,
        ),
    )(x, w1, b1_2d, w2, b2_2d, gamma_2d, beta_2d)

    if B_pad != B:
        out = out[:B]
    return out


def reference(x, w1, b1, w2, b2, gamma, beta):
    projected = x @ w1 + b1
    h = jnp.where(projected > 0, projected, 0.01 * projected)
    y = h @ w2 + b2
    z = y + projected
    mean = jnp.mean(z, axis=-1, keepdims=True)
    var = jnp.mean((z - mean) ** 2, axis=-1, keepdims=True)
    return (z - mean) / jnp.sqrt(var + 1e-5) * gamma + beta


if __name__ == "__main__":
    key = jax.random.PRNGKey(0)
    # Small shapes: batch=20 (not a multiple of the tile -> exercises padding),
    # embedding_dim=32, projection_dim=128.
    B, E, P = 20, 32, 128

    kx, k1, kb1, k2, kb2 = jax.random.split(key, 5)
    x = jax.random.normal(kx, (B, E), dtype=jnp.float32)

    # Deterministic parameter init (shapes follow nn.Linear / nn.LayerNorm).
    w1 = jax.random.normal(k1, (E, P), dtype=jnp.float32) * (1.0 / jnp.sqrt(E))
    b1 = jax.random.normal(kb1, (P,), dtype=jnp.float32) * 0.01
    w2 = jax.random.normal(k2, (P, P), dtype=jnp.float32) * (1.0 / jnp.sqrt(P))
    b2 = jax.random.normal(kb2, (P,), dtype=jnp.float32) * 0.01
    gamma = jnp.ones((P,), dtype=jnp.float32)
    beta = jnp.zeros((P,), dtype=jnp.float32)

    ref = reference(x, w1, b1, w2, b2, gamma, beta)

    # Multi-step grid (TB=8 -> grid of 3 with padding 20 -> 24).
    out_small_tile = projection_head(x, w1, b1, w2, b2, gamma, beta, tb_max=8)
    out_small_tile = jax.block_until_ready(out_small_tile)
    assert out_small_tile.shape == (B, P)
    assert jnp.allclose(out_small_tile, ref, atol=1e-4, rtol=1e-4)

    # Default (large) tile path: single grid step here.
    out_default = projection_head(x, w1, b1, w2, b2, gamma, beta)
    out_default = jax.block_until_ready(out_default)
    assert out_default.shape == (B, P)
    assert jnp.allclose(out_default, ref, atol=1e-4, rtol=1e-4)

    print("KERNEL_OK")
</pallas_src>

<mosaic_0001>
module attributes {stable_mosaic.version = 11 : i64} {
  func.func @projection_head_kernel(%arg0: i32, %arg1: memref<8x32xf32, #tpu.memory_space<vmem>>, %arg2: memref<32x128xf32, #tpu.memory_space<vmem>>, %arg3: memref<1x128xf32, #tpu.memory_space<vmem>>, %arg4: memref<128x128xf32, #tpu.memory_space<vmem>>, %arg5: memref<1x128xf32, #tpu.memory_space<vmem>>, %arg6: memref<1x128xf32, #tpu.memory_space<vmem>>, %arg7: memref<1x128xf32, #tpu.memory_space<vmem>>, %arg8: memref<8x128xf32, #tpu.memory_space<vmem>>) attributes {dimension_semantics = [#tpu.dimension_semantics<parallel>], iteration_bounds = array<i64: 3>, scalar_prefetch = 0 : i64, scratch_operands = 0 : i64, tpu.core_type = #tpu.core_type<tc>, window_params = [{transform_indices = @transform_0, window_bounds = array<i64: 8, 32>}, {pipeline_mode = #tpu.pipeline_mode<synchronous>, transform_indices = @transform_1, window_bounds = array<i64: 32, 128>}, {pipeline_mode = #tpu.pipeline_mode<synchronous>, transform_indices = @transform_2, window_bounds = array<i64: 1, 128>}, {pipeline_mode = #tpu.pipeline_mode<synchronous>, transform_indices = @transform_3, window_bounds = array<i64: 128, 128>}, {pipeline_mode = #tpu.pipeline_mode<synchronous>, transform_indices = @transform_4, window_bounds = array<i64: 1, 128>}, {pipeline_mode = #tpu.pipeline_mode<synchronous>, transform_indices = @transform_5, window_bounds = array<i64: 1, 128>}, {pipeline_mode = #tpu.pipeline_mode<synchronous>, transform_indices = @transform_6, window_bounds = array<i64: 1, 128>}, {transform_indices = @transform_7, window_bounds = array<i64: 8, 128>}]} {
    %c0 = arith.constant 0 : index
    %c0_0 = arith.constant 0 : index
    %0 = vector.load %arg2[%c0, %c0_0] : memref<32x128xf32, #tpu.memory_space<vmem>>, vector<32x128xf32>
    %c0_1 = arith.constant 0 : index
    %c0_2 = arith.constant 0 : index
    %1 = vector.load %arg4[%c0_1, %c0_2] : memref<128x128xf32, #tpu.memory_space<vmem>>, vector<128x128xf32>
    %c0_3 = arith.constant 0 : index
    %c0_4 = arith.constant 0 : index
    %2 = vector.load %arg3[%c0_3, %c0_4] : memref<1x128xf32, #tpu.memory_space<vmem>>, vector<1x128xf32>
    %c0_5 = arith.constant 0 : index
    %c0_6 = arith.constant 0 : index
    %3 = vector.load %arg5[%c0_5, %c0_6] : memref<1x128xf32, #tpu.memory_space<vmem>>, vector<1x128xf32>
    %c0_7 = arith.constant 0 : index
    %c0_8 = arith.constant 0 : index
    %4 = vector.load %arg6[%c0_7, %c0_8] : memref<1x128xf32, #tpu.memory_space<vmem>>, vector<1x128xf32>
    %c0_9 = arith.constant 0 : index
    %c0_10 = arith.constant 0 : index
    %5 = vector.load %arg7[%c0_9, %c0_10] : memref<1x128xf32, #tpu.memory_space<vmem>>, vector<1x128xf32>
    %c0_11 = arith.constant 0 : index
    %c0_12 = arith.constant 0 : index
    %6 = vector.load %arg1[%c0_11, %c0_12] : memref<8x32xf32, #tpu.memory_space<vmem>>, vector<8x32xf32>
    %cst = arith.constant dense<0.000000e+00> : vector<8x128xf32>
    %7 = tpu.matmul %6, %0, %cst {dimension_numbers = #tpu.dot_dimension_numbers<[1], [0], [0], [1], [0, 0, 1, 1], [], []>} : vector<8x32xf32>, vector<32x128xf32>, vector<8x128xf32> -> vector<8x128xf32>
    %8 = vector.broadcast %2 : vector<1x128xf32> to vector<8x128xf32>
    %9 = arith.addf %7, %8 : vector<8x128xf32>
    %cst_13 = arith.constant 0.000000e+00 : f32
    %10 = vector.broadcast %cst_13 : f32 to vector<8x128xf32>
    %11 = arith.cmpf ogt, %9, %10 : vector<8x128xf32>
    %cst_14 = arith.constant 0.00999999977 : f32
    %12 = vector.broadcast %cst_14 : f32 to vector<8x128xf32>
    %13 = arith.mulf %12, %9 : vector<8x128xf32>
    %14 = arith.select %11, %9, %13 : vector<8x128xi1>, vector<8x128xf32>
    %cst_15 = arith.constant dense<0.000000e+00> : vector<8x128xf32>
    %15 = tpu.matmul %14, %1, %cst_15 {dimension_numbers = #tpu.dot_dimension_numbers<[1], [0], [0], [1], [0, 0, 1, 1], [], []>} : vector<8x128xf32>, vector<128x128xf32>, vector<8x128xf32> -> vector<8x128xf32>
    %16 = vector.broadcast %3 : vector<1x128xf32> to vector<8x128xf32>
    %17 = arith.addf %15, %16 : vector<8x128xf32>
    %18 = arith.addf %17, %9 : vector<8x128xf32>
    %cst_16 = arith.constant dense<0.000000e+00> : vector<8xf32>
    %19 = vector.multi_reduction <add>, %18, %cst_16 [1] : vector<8x128xf32> to vector<8xf32>
    %20 = vector.shape_cast %19 : vector<8xf32> to vector<8x1xf32>
    %cst_17 = arith.constant 1.280000e+02 : f32
    %21 = vector.broadcast %cst_17 : f32 to vector<8x1xf32>
    %22 = arith.divf %20, %21 : vector<8x1xf32>
    %23 = vector.broadcast %22 : vector<8x1xf32> to vector<8x128xf32>
    %24 = arith.subf %18, %23 : vector<8x128xf32>
    %25 = arith.mulf %24, %24 : vector<8x128xf32>
    %cst_18 = arith.constant dense<0.000000e+00> : vector<8xf32>
    %26 = vector.multi_reduction <add>, %25, %cst_18 [1] : vector<8x128xf32> to vector<8xf32>
    %27 = vector.shape_cast %26 : vector<8xf32> to vector<8x1xf32>
    %cst_19 = arith.constant 1.280000e+02 : f32
    %28 = vector.broadcast %cst_19 : f32 to vector<8x1xf32>
    %29 = arith.divf %27, %28 : vector<8x1xf32>
    %cst_20 = arith.constant 9.99999974E-6 : f32
    %30 = vector.broadcast %cst_20 : f32 to vector<8x1xf32>
    %31 = arith.addf %29, %30 : vector<8x1xf32>
    %32 = math.rsqrt %31 : vector<8x1xf32>
    %33 = vector.broadcast %32 : vector<8x1xf32> to vector<8x128xf32>
    %34 = arith.mulf %24, %33 : vector<8x128xf32>
    %35 = vector.broadcast %4 : vector<1x128xf32> to vector<8x128xf32>
    %36 = arith.mulf %34, %35 : vector<8x128xf32>
    %37 = vector.broadcast %5 : vector<1x128xf32> to vector<8x128xf32>
    %38 = arith.addf %36, %37 : vector<8x128xf32>
    %c0_21 = arith.constant 0 : index
    %c0_22 = arith.constant 0 : index
    %39 = vector.load %arg8[%c0_21, %c0_22] : memref<8x128xf32, #tpu.memory_space<vmem>>, vector<8x128xf32>
    tpu.vector_store %arg8[%c0_21, %c0_22], %38 {strides = array<i32>} : memref<8x128xf32, #tpu.memory_space<vmem>>, vector<8x128xf32>,
    return
  }
  func.func @transform_0(%arg0: i32) -> (i32, i32) {
    %c0_i32 = arith.constant 0 : i32
    %c0_i32_0 = arith.constant 0 : i32
    return %arg0, %c0_i32 : i32, i32
  }
  func.func @transform_1(%arg0: i32) -> (i32, i32) {
    %c0_i32 = arith.constant 0 : i32
    %c0_i32_0 = arith.constant 0 : i32
    %c0_i32_1 = arith.constant 0 : i32
    return %c0_i32, %c0_i32_0 : i32, i32
  }
  func.func @transform_2(%arg0: i32) -> (i32, i32) {
    %c0_i32 = arith.constant 0 : i32
    %c0_i32_0 = arith.constant 0 : i32
    %c0_i32_1 = arith.constant 0 : i32
    return %c0_i32, %c0_i32_0 : i32, i32
  }
  func.func @transform_3(%arg0: i32) -> (i32, i32) {
    %c0_i32 = arith.constant 0 : i32
    %c0_i32_0 = arith.constant 0 : i32
    %c0_i32_1 = arith.constant 0 : i32
    return %c0_i32, %c0_i32_0 : i32, i32
  }
  func.func @transform_4(%arg0: i32) -> (i32, i32) {
    %c0_i32 = arith.constant 0 : i32
    %c0_i32_0 = arith.constant 0 : i32
    %c0_i32_1 = arith.constant 0 : i32
    return %c0_i32, %c0_i32_0 : i32, i32
  }
  func.func @transform_5(%arg0: i32) -> (i32, i32) {
    %c0_i32 = arith.constant 0 : i32
    %c0_i32_0 = arith.constant 0 : i32
    %c0_i32_1 = arith.constant 0 : i32
    return %c0_i32, %c0_i32_0 : i32, i32
  }
  func.func @transform_6(%arg0: i32) -> (i32, i32) {
    %c0_i32 = arith.constant 0 : i32
    %c0_i32_0 = arith.constant 0 : i32
    %c0_i32_1 = arith.constant 0 : i32
    return %c0_i32, %c0_i32_0 : i32, i32
  }
  func.func @transform_7(%arg0: i32) -> (i32, i32) {
    %c0_i32 = arith.constant 0 : i32
    %c0_i32_0 = arith.constant 0 : i32
    return %arg0, %c0_i32 : i32, i32
  }
}

</mosaic_0001>

<llo_original>
// kernel: tpu_custom_call.1
$region0: #{tpu_custom_call.1}
  #allocation0 [shape = 'u32[]', space=smem, size = 0x4, offset = 0x4, fixed_abs, tag = 'smem constant byte address 0x4 - core index']
  #allocation1 [shape = 'u32[144,128]{1,0:T(1,128)}', space=vmem, size = 0x12000, scoped, tag = 'internal scratch']
  %s0 = inlined_call_operand.hbm [shape: f32[24,32], index: 0, kind: input, shape index: {}]
  %s1 = inlined_call_operand.hbm [shape: f32[32,128], index: 1, kind: input, shape index: {}]
  %s2 = inlined_call_operand.vmem [shape: f32[1,128], index: 2, kind: input, shape index: {}]
  %s3 = inlined_call_operand.hbm [shape: f32[128,128], index: 3, kind: input, shape index: {}]
  %s4 = inlined_call_operand.vmem [shape: f32[1,128], index: 4, kind: input, shape index: {}]
  %s5 = inlined_call_operand.vmem [shape: f32[1,128], index: 5, kind: input, shape index: {}]
  %s6 = inlined_call_operand.vmem [shape: f32[1,128], index: 6, kind: input, shape index: {}]
  %s7 = inlined_call_operand.hbm [shape: f32[24,128], index: 7, kind: output, shape index: {}]
  %s8 = sld [smem:[#allocation0]]
  $region73: #{tpu_custom_call.1} parent=0
    _
  %s10 = ssub.s32 1, %s8
  %s11 = scalar_select 0, %s10, %s8
  $region1: #{tpu_custom_call.1} parent=0
    #allocation2 [shape = 'u8[8192]{0}', space=vmem, size = 0x2000, scoped, tag = 'input window, operand 0']
    #allocation3 [shape = 's32[2]{0}', space=sflag, size = 0x8, scoped, tag = 'scoped memory for tpu_custom_call.1']
    #allocation4 [shape = 's32[2]{0}', space=sflag, size = 0x8, scoped, tag = 'scoped memory for tpu_custom_call.1']
    #allocation5 [shape = 'u8[16384]{0}', space=vmem, size = 0x4000, scoped, tag = 'input window, operand 1, single buffered']
    #allocation6 [shape = 's32[1]{0}', space=sflag, size = 0x4, scoped, tag = 'scoped memory for tpu_custom_call.1']
    #allocation7 [shape = 'u8[65536]{0}', space=vmem, size = 0x10000, scoped, tag = 'input window, operand 3, single buffered']
    #allocation8 [shape = 'u8[8192]{0}', space=vmem, size = 0x2000, scoped, tag = 'output window, operand 0']
    %12 = vsyncpa [#allocation3], 0
    %s13 = scalar_lea.sflag [#allocation3], 1
    %14 = vsyncpa %s13, 0
    %15 = vsyncpa [#allocation6], 0
    %16 = vsyncpa [#allocation4], 0
    %s17 = scalar_lea.sflag [#allocation4], 1
    %18 = vsyncpa %s17, 0
    loop: start=0, step=1, limit=5
    $region2: #{tpu_custom_call.1} parent=1 // loop_pre_header
      _
    $region3: #{tpu_custom_call.1} parent=1 // loop_header
      %s20 = sphi 0, %s24
      %p21 = scmp.ge.s32.totalorder %s20, 5
      %s30 = sphi 0, %s32
      %s33 = sphi 0, %s30
      %s34 = sphi 0, %s33
      %s50 = sphi 0, %s34
      %s54 = sphi 0, %s54
      %s56 = sphi 0, %s54
      %s57 = sphi 0, %s56
      %s71 = sphi 0, %s57
      %s75 = sphi 0, %s75
      %s77 = sphi 0, %s75
      %s78 = sphi 0, %s77
      %s92 = sphi 0, %s78
      %s96 = sphi 0, %s96
      %s98 = sphi 0, %s96
      %s99 = sphi 0, %s98
      %s113 = sphi 0, %s99
      %s117 = sphi 0, %s117
      %s119 = sphi 0, %s117
      %s120 = sphi 0, %s119
      %s134 = sphi 0, %s120
      %s138 = sphi 0, %s138
      %s140 = sphi 0, %s138
      %s141 = sphi 0, %s140
      %s155 = sphi 0, %s141
      %s159 = sphi 0, %s159
      %s161 = sphi 0, %s159
      %s162 = sphi 0, %s161
      %s176 = sphi 0, %s162
      %s182 = sphi 0, %s184
      %s185 = sphi 0, %s182
      %s186 = sphi 0, %s185
      %s202 = sphi 0, %s186
    $region4: #{tpu_custom_call.1} parent=1 // loop_header_branch
      %23 = sbr.rel (%p21) target = $region8
    $region5: #{tpu_custom_call.1} parent=1 // loop_body
      %s25 = ssub.s32 %s20, 1
      %s26 = ssub.s32 %s20, 2
      %s27 = sadd.s32 %s20, 1
      %s28 = ssub.s32 %s20, %s27
      %p29 = scmp.eq.s32.totalorder %s28, 0
      %s31 = sadd.s32 %s30, 1
      %s32 = scalar_select %p29, %s30, %s31
      %p35 = pneg %p29
      %p36 = scmp.eq.s32.totalorder %s20, 2
      %p37 = por %p35, %p36
      %p38 = scmp.ne.s32.totalorder %s30, %s33
      %p39 = scmp.eq.s32.totalorder %s20, 0
      %p40 = por %p38, %p39
      %p41 = scmp.ne.s32.totalorder %s30, %s33
      %p42 = scmp.eq.s32.totalorder %s25, 2
      %p43 = por %p41, %p42
      %p44 = scmp.ne.s32.totalorder %s33, %s34
      %p45 = scmp.eq.s32.totalorder %s25, 0
      %p46 = por %p44, %p45
      %p47 = scmp.ne.s32.totalorder %s33, %s34
      %p48 = scmp.eq.s32.totalorder %s26, 2
      %p49 = por %p47, %p48
      %p51 = scmp.ne.s32.totalorder %s34, %s50
      %p52 = scmp.eq.s32.totalorder %s26, 0
      %p53 = por %p51, %p52
      %s55 = sadd.s32 %s54, 1
      %p58 = scmp.eq.s32.totalorder %s20, 2
      %p59 = scmp.ne.s32.totalorder %s54, %s56
      %p60 = scmp.eq.s32.totalorder %s20, 0
      %p61 = por %p59, %p60
      %p62 = scmp.ne.s32.totalorder %s54, %s56
      %p63 = scmp.eq.s32.totalorder %s25, 2
      %p64 = por %p62, %p63
      %p65 = scmp.ne.s32.totalorder %s56, %s57
      %p66 = scmp.eq.s32.totalorder %s25, 0
      %p67 = por %p65, %p66
      %p68 = scmp.ne.s32.totalorder %s56, %s57
      %p69 = scmp.eq.s32.totalorder %s26, 2
      %p70 = por %p68, %p69
      %p72 = scmp.ne.s32.totalorder %s57, %s71
      %p73 = scmp.eq.s32.totalorder %s26, 0
      %p74 = por %p72, %p73
      %s76 = sadd.s32 %s75, 1
      %p79 = scmp.eq.s32.totalorder %s20, 2
      %p80 = scmp.ne.s32.totalorder %s75, %s77
      %p81 = scmp.eq.s32.totalorder %s20, 0
      %p82 = por %p80, %p81
      %p83 = scmp.ne.s32.totalorder %s75, %s77
      %p84 = scmp.eq.s32.totalorder %s25, 2
      %p85 = por %p83, %p84
      %p86 = scmp.ne.s32.totalorder %s77, %s78
      %p87 = scmp.eq.s32.totalorder %s25, 0
      %p88 = por %p86, %p87
      %p89 = scmp.ne.s32.totalorder %s77, %s78
      %p90 = scmp.eq.s32.totalorder %s26, 2
      %p91 = por %p89, %p90
      %p93 = scmp.ne.s32.totalorder %s78, %s92
      %p94 = scmp.eq.s32.totalorder %s26, 0
      %p95 = por %p93, %p94
      %s97 = sadd.s32 %s96, 1
      %p100 = scmp.eq.s32.totalorder %s20, 2
      %p101 = scmp.ne.s32.totalorder %s96, %s98
      %p102 = scmp.eq.s32.totalorder %s20, 0
      %p103 = por %p101, %p102
      %p104 = scmp.ne.s32.totalorder %s96, %s98
      %p105 = scmp.eq.s32.totalorder %s25, 2
      %p106 = por %p104, %p105
      %p107 = scmp.ne.s32.totalorder %s98, %s99
      %p108 = scmp.eq.s32.totalorder %s25, 0
      %p109 = por %p107, %p108
      %p110 = scmp.ne.s32.totalorder %s98, %s99
      %p111 = scmp.eq.s32.totalorder %s26, 2
      %p112 = por %p110, %p111
      %p114 = scmp.ne.s32.totalorder %s99, %s113
      %p115 = scmp.eq.s32.totalorder %s26, 0
      %p116 = por %p114, %p115
      %s118 = sadd.s32 %s117, 1
      %p121 = scmp.eq.s32.totalorder %s20, 2
      %p122 = scmp.ne.s32.totalorder %s117, %s119
      %p123 = scmp.eq.s32.totalorder %s20, 0
      %p124 = por %p122, %p123
      %p125 = scmp.ne.s32.totalorder %s117, %s119
      %p126 = scmp.eq.s32.totalorder %s25, 2
      %p127 = por %p125, %p126
      %p128 = scmp.ne.s32.totalorder %s119, %s120
      %p129 = scmp.eq.s32.totalorder %s25, 0
      %p130 = por %p128, %p129
      %p131 = scmp.ne.s32.totalorder %s119, %s120
      %p132 = scmp.eq.s32.totalorder %s26, 2
      %p133 = por %p131, %p132
      %p135 = scmp.ne.s32.totalorder %s120, %s134
      %p136 = scmp.eq.s32.totalorder %s26, 0
      %p137 = por %p135, %p136
      %s139 = sadd.s32 %s138, 1
      %p142 = scmp.eq.s32.totalorder %s20, 2
      %p143 = scmp.ne.s32.totalorder %s138, %s140
      %p144 = scmp.eq.s32.totalorder %s20, 0
      %p145 = por %p143, %p144
      %p146 = scmp.ne.s32.totalorder %s138, %s140
      %p147 = scmp.eq.s32.totalorder %s25, 2
      %p148 = por %p146, %p147
      %p149 = scmp.ne.s32.totalorder %s140, %s141
      %p150 = scmp.eq.s32.totalorder %s25, 0
      %p151 = por %p149, %p150
      %p152 = scmp.ne.s32.totalorder %s140, %s141
      %p153 = scmp.eq.s32.totalorder %s26, 2
      %p154 = por %p152, %p153
      %p156 = scmp.ne.s32.totalorder %s141, %s155
      %p157 = scmp.eq.s32.totalorder %s26, 0
      %p158 = por %p156, %p157
      %s160 = sadd.s32 %s159, 1
      %p163 = scmp.eq.s32.totalorder %s20, 2
      %p164 = scmp.ne.s32.totalorder %s159, %s161
      %p165 = scmp.eq.s32.totalorder %s20, 0
      %p166 = por %p164, %p165
      %p167 = scmp.ne.s32.totalorder %s159, %s161
      %p168 = scmp.eq.s32.totalorder %s25, 2
      %p169 = por %p167, %p168
      %p170 = scmp.ne.s32.totalorder %s161, %s162
      %p171 = scmp.eq.s32.totalorder %s25, 0
      %p172 = por %p170, %p171
      %p173 = scmp.ne.s32.totalorder %s161, %s162
      %p174 = scmp.eq.s32.totalorder %s26, 2
      %p175 = por %p173, %p174
      %p177 = scmp.ne.s32.totalorder %s162, %s176
      %p178 = scmp.eq.s32.totalorder %s26, 0
      %p179 = por %p177, %p178
      %s180 = ssub.s32 %s20, %s27
      %p181 = scmp.eq.s32.totalorder %s180, 0
      %s183 = sadd.s32 %s182, 1
      %s184 = scalar_select %p181, %s182, %s183
      %p187 = pneg %p181
      %p188 = scmp.eq.s32.totalorder %s20, 2
      %p189 = por %p187, %p188
      %p190 = scmp.ne.s32.totalorder %s182, %s185
      %p191 = scmp.eq.s32.totalorder %s20, 0
      %p192 = por %p190, %p191
      %p193 = scmp.ne.s32.totalorder %s182, %s185
      %p194 = scmp.eq.s32.totalorder %s25, 2
      %p195 = por %p193, %p194
      %p196 = scmp.ne.s32.totalorder %s185, %s186
      %p197 = scmp.eq.s32.totalorder %s25, 0
      %p198 = por %p196, %p197
      %p199 = scmp.ne.s32.totalorder %s185, %s186
      %p200 = scmp.eq.s32.totalorder %s26, 2
      %p201 = por %p199, %p200
      %p203 = scmp.ne.s32.totalorder %s186, %s202
      %p204 = scmp.eq.s32.totalorder %s26, 0
      %p205 = por %p203, %p204
      %p206 = scmp.le.s32.totalorder 1, %s20
      %p207 = scmp.lt.s32.totalorder %s20, 4
      %p208 = pnand %p206, %p207
      %p209 = pneg %p208
      // Predicated region
      $region9: #{tpu_custom_call.1} parent=5 // pred_check
        _
      $region10: #{tpu_custom_call.1} parent=5 // pred_check_branch
        %211 = sbr.rel (%p208) target = $region12
      $region11: #{tpu_custom_call.1} parent=5 // pred_region
        %s212 = ssub.s32 %s20, 1
        // Predicated region
        $region13: #{tpu_custom_call.1} parent=11 // pred_check
          %p213 = pneg %p67
        $region14: #{tpu_custom_call.1} parent=11 // pred_check_branch
          %215 = sbr.rel (%p213) target = $region16
        $region15: #{tpu_custom_call.1} parent=11 // pred_region
          %s217 = ssub.s32 512, 512
          %218 = vsyncadd [#allocation6], %s217
          %s219 = sshll.u32 [#allocation5], 4
          %s220 = int_to_ptr.vmem [resolvable:$true] %s219
          %225 = dma.hbm_to_vmem [thread:$0]  %s1, 512, %s220, [#allocation6], 128, 128, 8
        $region16: #{tpu_custom_call.1} parent=11 // pred_fallthru
          _
        // Predicated region
        $region17: #{tpu_custom_call.1} parent=11 // pred_check
          %p226 = pneg %p88
        $region18: #{tpu_custom_call.1} parent=11 // pred_check_branch
          %228 = sbr.rel (%p226) target = $region20
        $region19: #{tpu_custom_call.1} parent=11 // pred_region
          _
        $region20: #{tpu_custom_call.1} parent=11 // pred_fallthru
          _
        // Predicated region
        $region21: #{tpu_custom_call.1} parent=11 // pred_check
          %p229 = pneg %p109
        $region22: #{tpu_custom_call.1} parent=11 // pred_check_branch
          %231 = sbr.rel (%p229) target = $region24
        $region23: #{tpu_custom_call.1} parent=11 // pred_region
          %s233 = ssub.s32 2048, 2048
          %234 = vsyncadd [#allocation6], %s233
          %s235 = sshll.u32 [#allocation7], 4
          %s236 = int_to_ptr.vmem [resolvable:$true] %s235
          %241 = dma.hbm_to_vmem [thread:$0]  %s3, 2048, %s236, [#allocation6], 128, 128, 8
        $region24: #{tpu_custom_call.1} parent=11 // pred_fallthru
          _
        // Predicated region
        $region25: #{tpu_custom_call.1} parent=11 // pred_check
          %p242 = pneg %p130
        $region26: #{tpu_custom_call.1} parent=11 // pred_check_branch
          %244 = sbr.rel (%p242) target = $region28
        $region27: #{tpu_custom_call.1} parent=11 // pred_region
          _
        $region28: #{tpu_custom_call.1} parent=11 // pred_fallthru
          _
        // Predicated region
        $region29: #{tpu_custom_call.1} parent=11 // pred_check
          %p245 = pneg %p151
        $region30: #{tpu_custom_call.1} parent=11 // pred_check_branch
          %247 = sbr.rel (%p245) target = $region32
        $region31: #{tpu_custom_call.1} parent=11 // pred_region
          _
        $region32: #{tpu_custom_call.1} parent=11 // pred_fallthru
          _
        // Predicated region
        $region33: #{tpu_custom_call.1} parent=11 // pred_check
          %p248 = pneg %p172
        $region34: #{tpu_custom_call.1} parent=11 // pred_check_branch
          %250 = sbr.rel (%p248) target = $region36
        $region35: #{tpu_custom_call.1} parent=11 // pred_region
          _
        $region36: #{tpu_custom_call.1} parent=11 // pred_fallthru
          _
      $region12: #{tpu_custom_call.1} parent=5 // pred_fallthru
        _
      %p251 = scmp.lt.s32.totalorder %s20, 3
      // Predicated region
      $region37: #{tpu_custom_call.1} parent=5 // pred_check
        %p252 = pneg %p251
      $region38: #{tpu_custom_call.1} parent=5 // pred_check_branch
        %254 = sbr.rel (%p252) target = $region40
      $region39: #{tpu_custom_call.1} parent=5 // pred_region
        // Predicated region
        $region41: #{tpu_custom_call.1} parent=39 // pred_check
          %p255 = pneg %p40
        $region42: #{tpu_custom_call.1} parent=39 // pred_check_branch
          %257 = sbr.rel (%p255) target = $region44
        $region43: #{tpu_custom_call.1} parent=39 // pred_region
          %s258 = sand.u32 %s30, 1
          %s259 = scalar_lea.sflag [#allocation3], %s258
          %s260 = sand.u32 %s30, 1
          %s261 = smul.addr %s260, 8
          %s262 = scalar_lea.vmem [#allocation2], %s261
          %s264 = ssub.s32 128, 128
          %265 = vsyncadd %s259, %s264
          %s266 = smul.addr %s20, 128
          %s267 = scalar_lea.hbm %s0, %s266
          %s269 = sshll.u32 %s262, 4
          %s270 = int_to_ptr.vmem [resolvable:$true] %s269
          %272 = dma.hbm_to_vmem [thread:$0]  %s267, 128, %s270, %s259
        $region44: #{tpu_custom_call.1} parent=39 // pred_fallthru
          _
      $region40: #{tpu_custom_call.1} parent=5 // pred_fallthru
        _
      %p273 = scmp.le.s32.totalorder 1, %s20
      %p274 = scmp.lt.s32.totalorder %s20, 4
      %p275 = pnand %p273, %p274
      %p276 = pneg %p275
      // Predicated region
      $region45: #{tpu_custom_call.1} parent=5 // pred_check
        _
      $region46: #{tpu_custom_call.1} parent=5 // pred_check_branch
        %278 = sbr.rel (%p275) target = $region48
      $region47: #{tpu_custom_call.1} parent=5 // pred_region
        %s279 = ssub.s32 %s20, 1
        %s280 = sand.u32 %s33, 1
        %s281 = scalar_lea.sflag [#allocation3], %s280
        %s282 = sand.u32 %s33, 1
        %s283 = smul.addr %s282, 8
        %s284 = scalar_lea.vmem [#allocation2], %s283
        // Predicated region
        $region49: #{tpu_custom_call.1} parent=47 // pred_check
          %p285 = pneg %p46
        $region50: #{tpu_custom_call.1} parent=47 // pred_check_branch
          %287 = sbr.rel (%p285) target = $region52
        $region51: #{tpu_custom_call.1} parent=47 // pred_region
          %288 = dma.done %s281, 128
        $region52: #{tpu_custom_call.1} parent=47 // pred_fallthru
          _
        // Predicated region
        $region53: #{tpu_custom_call.1} parent=47 // pred_check
          %p289 = pneg %p67
        $region54: #{tpu_custom_call.1} parent=47 // pred_check_branch
          %291 = sbr.rel (%p289) target = $region56
        $region55: #{tpu_custom_call.1} parent=47 // pred_region
          %292 = dma.done [#allocation6], 512
        $region56: #{tpu_custom_call.1} parent=47 // pred_fallthru
          _
        // Predicated region
        $region57: #{tpu_custom_call.1} parent=47 // pred_check
          %p293 = pneg %p109
        $region58: #{tpu_custom_call.1} parent=47 // pred_check_branch
          %295 = sbr.rel (%p293) target = $region60
        $region59: #{tpu_custom_call.1} parent=47 // pred_region
          %296 = dma.done [#allocation6], 2048
        $region60: #{tpu_custom_call.1} parent=47 // pred_fallthru
          _
        %s297 = sand.u32 %s33, 1
        %s298 = scalar_lea.sflag [#allocation3], %s297
        %s299 = sand.u32 %s33, 1
        %s300 = smul.addr %s299, 8
        %s301 = scalar_lea.vmem [#allocation2], %s300
        %p302 = pneg %p46
        %p303 = pneg %p43
        %p304 = pneg %p67
        %p305 = pneg %p64
        %p306 = pneg %p88
        %p307 = pneg %p85
        %p308 = pneg %p109
        %p309 = pneg %p106
        %p310 = pneg %p130
        %p311 = pneg %p127
        %p312 = pneg %p151
        %p313 = pneg %p148
        %p314 = pneg %p172
        %p315 = pneg %p169
        %p316 = pneg %p198
        %p317 = pneg %p195
        %s318 = sand.u32 %s185, 1
        %s319 = scalar_lea.sflag [#allocation4], %s318
        %s320 = sand.u32 %s185, 1
        %s321 = smul.addr %s320, 8
        %s322 = scalar_lea.vmem [#allocation8], %s321
        %v323 = vld [vmem:[#allocation5] sm:$0xff]
        %v324 = vld [vmem:[#allocation5 + $0x8] sm:$0xff]
        %v325 = vld [vmem:[#allocation5 + $0x10] sm:$0xff]
        %v326 = vld [vmem:[#allocation5 + $0x18] sm:$0xff]
        %v327 = vld [vmem:[#allocation7] sm:$0xff]
        %v328 = vld [vmem:[#allocation7 + $0x8] sm:$0xff]
        %v329 = vld [vmem:[#allocation7 + $0x10] sm:$0xff]
        %v330 = vld [vmem:[#allocation7 + $0x18] sm:$0xff]
        %v331 = vld [vmem:[#allocation7 + $0x20] sm:$0xff]
        %v332 = vld [vmem:[#allocation7 + $0x28] sm:$0xff]
        %v333 = vld [vmem:[#allocation7 + $0x30] sm:$0xff]
        %v334 = vld [vmem:[#allocation7 + $0x38] sm:$0xff]
        %v335 = vld [vmem:[#allocation7 + $0x40] sm:$0xff]
        %v336 = vld [vmem:[#allocation7 + $0x48] sm:$0xff]
        %v337 = vld [vmem:[#allocation7 + $0x50] sm:$0xff]
        %v338 = vld [vmem:[#allocation7 + $0x58] sm:$0xff]
        %v339 = vld [vmem:[#allocation7 + $0x60] sm:$0xff]
        %v340 = vld [vmem:[#allocation7 + $0x68] sm:$0xff]
        %v341 = vld [vmem:[#allocation7 + $0x70] sm:$0xff]
        %v342 = vld [vmem:[#allocation7 + $0x78] sm:$0xff]
        %v343 = vld [vmem:[%s2] sm:$0x1]
        %v344 = vld [vmem:[%s4] sm:$0x1]
        %v345 = vld [vmem:[%s5] sm:$0x1]
        %v346 = vld [vmem:[%s6] sm:$0x1]
        %v347 = vld [vmem:[%s284] sm:$0xff]
        %v349 = vlaneseq
        %v350 = vshrl.u32 %v349, 7
        %v351 = vsub.s32 0, %v350
        %v352 = vrot.slane %v343, %v351
        %vm354 = vcmask 261120
        %v356 = vsel %vm354, %v347, 0
        %358 = vmatprep.subr.mxu0 0.0
        %359 = vmatpush1.msra.mxu0 0.0
        %360 = vmatprep.subr.mxu0 0.0
        %361 = vmatpush1.msra.mxu0 0.0
        %362 = vmatprep.subr.mxu0 0.0
        %363 = vmatpush1.msra.mxu0 0.0
        %364 = vmatprep.subr.mxu0 0.0
        %365 = vmatpush1.msra.mxu0 0.0
        %366 = vmatprep.subr.mxu0 0.0
        %367 = vmatpush1.msra.mxu0 0.0
        %368 = vmatprep.subr.mxu0 0.0
        %369 = vmatpush1.msra.mxu0 0.0
        %370 = vmatprep.subr.mxu0 0.0
        %371 = vmatpush1.msra.mxu0 0.0
        %372 = vmatprep.subr.mxu0 0.0
        %373 = vmatpush1.msra.mxu0 0.0
        %374 = vmatprep.subr.mxu0 0.0
        %375 = vmatpush1.msra.mxu0 0.0
        %376 = vmatprep.subr.mxu0 0.0
        %377 = vmatpush1.msra.mxu0 0.0
        %378 = vmatprep.subr.mxu0 0.0
        %379 = vmatpush1.msra.mxu0 0.0
        %380 = vmatprep.subr.mxu0 0.0
        %381 = vmatpush1.msra.mxu0 0.0
        %382 = vmatprep.subr.mxu0 0.0
        %383 = vmatpush1.msra.mxu0 %v326
        %384 = vmatprep.subr.mxu0 0.0
        %385 = vmatpush1.msra.mxu0 %v325
        %386 = vmatprep.subr.mxu0 0.0
        %387 = vmatpush1.msra.mxu0 %v324
        %388 = vmatprep.subr.mxu0 0.0
        %389 = vmatpush1.msra.mxu0 %v323
        %390 = vmatprep.subr.mxu0 0.0
        %391 = vmatpush2.msra.mxu0 0.0
        %392 = vmatprep.subr.mxu0 0.0
        %393 = vmatpush2.msra.mxu0 0.0
        %394 = vmatprep.subr.mxu0 0.0
        %395 = vmatpush2.msra.mxu0 0.0
        %396 = vmatprep.subr.mxu0 0.0
        %397 = vmatpush2.msra.mxu0 0.0
        %398 = vmatprep.subr.mxu0 0.0
        %399 = vmatpush2.msra.mxu0 0.0
        %400 = vmatprep.subr.mxu0 0.0
        %401 = vmatpush2.msra.mxu0 0.0
        %402 = vmatprep.subr.mxu0 0.0
        %403 = vmatpush2.msra.mxu0 0.0
        %404 = vmatprep.subr.mxu0 0.0
        %405 = vmatpush2.msra.mxu0 0.0
        %406 = vmatprep.subr.mxu0 0.0
        %407 = vmatpush2.msra.mxu0 0.0
        %408 = vmatprep.subr.mxu0 0.0
        %409 = vmatpush2.msra.mxu0 0.0
        %410 = vmatprep.subr.mxu0 0.0
        %411 = vmatpush2.msra.mxu0 0.0
        %412 = vmatprep.subr.mxu0 0.0
        %413 = vmatpush2.msra.mxu0 0.0
        %414 = vmatprep.subr.mxu0 0.0
        %415 = vmatpush2.msra.mxu0 0.0
        %416 = vmatprep.subr.mxu0 0.0
        %417 = vmatpush2.msra.mxu0 0.0
        %418 = vmatprep.subr.mxu0 0.0
        %419 = vmatpush2.msra.mxu0 0.0
        %420 = vmatprep.subr.mxu0 0.0
        %421 = vmatpush2.msra.mxu0 0.0
        %422 = vmatprep.mubr.f32.mxu0 0.0
        %423 = vmatmul.mubr.f32.gmra.mxu0 %v356
        %v424 = vpop.f32.mrf.mxu0
        %v425 = vadd.f32 %v352, %v424
        %v426 = vpop.f32.mrf.mxu0
        %427 = vdwg.mxu0
        %vm428 = vcmp.gt.f32.partialorder %v425, 0.0
        %v429 = vmul.f32 %v425, 0.01
        %v430 = vsel %vm428, %v425, %v429
        %v432 = vlaneseq
        %v433 = vshrl.u32 %v432, 7
        %v434 = vsub.s32 0, %v433
        %v435 = vrot.slane %v344, %v434
        %437 = vmatprep.subr.mxu0 0.0
        %438 = vmatpush1.msra.mxu0 %v342
        %439 = vmatprep.subr.mxu0 0.0
        %440 = vmatpush1.msra.mxu0 %v341
        %441 = vmatprep.subr.mxu0 0.0
        %442 = vmatpush1.msra.mxu0 %v340
        %443 = vmatprep.subr.mxu0 0.0
        %444 = vmatpush1.msra.mxu0 %v339
        %445 = vmatprep.subr.mxu0 0.0
        %446 = vmatpush1.msra.mxu0 %v338
        %447 = vmatprep.subr.mxu0 0.0
        %448 = vmatpush1.msra.mxu0 %v337
        %449 = vmatprep.subr.mxu0 0.0
        %450 = vmatpush1.msra.mxu0 %v336
        %451 = vmatprep.subr.mxu0 0.0
        %452 = vmatpush1.msra.mxu0 %v335
        %453 = vmatprep.subr.mxu0 0.0
        %454 = vmatpush1.msra.mxu0 %v334
        %455 = vmatprep.subr.mxu0 0.0
        %456 = vmatpush1.msra.mxu0 %v333
        %457 = vmatprep.subr.mxu0 0.0
        %458 = vmatpush1.msra.mxu0 %v332
        %459 = vmatprep.subr.mxu0 0.0
        %460 = vmatpush1.msra.mxu0 %v331
        %461 = vmatprep.subr.mxu0 0.0
        %462 = vmatpush1.msra.mxu0 %v330
        %463 = vmatprep.subr.mxu0 0.0
        %464 = vmatpush1.msra.mxu0 %v329
        %465 = vmatprep.subr.mxu0 0.0
        %466 = vmatpush1.msra.mxu0 %v328
        %467 = vmatprep.subr.mxu0 0.0
        %468 = vmatpush1.msra.mxu0 %v327
        %469 = vmatprep.subr.mxu0 0.0
        %470 = vmatpush2.msra.mxu0 0.0
        %471 = vmatprep.subr.mxu0 0.0
        %472 = vmatpush2.msra.mxu0 0.0
        %473 = vmatprep.subr.mxu0 0.0
        %474 = vmatpush2.msra.mxu0 0.0
        %475 = vmatprep.subr.mxu0 0.0
        %476 = vmatpush2.msra.mxu0 0.0
        %477 = vmatprep.subr.mxu0 0.0
        %478 = vmatpush2.msra.mxu0 0.0
        %479 = vmatprep.subr.mxu0 0.0
        %480 = vmatpush2.msra.mxu0 0.0
        %481 = vmatprep.subr.mxu0 0.0
        %482 = vmatpush2.msra.mxu0 0.0
        %483 = vmatprep.subr.mxu0 0.0
        %484 = vmatpush2.msra.mxu0 0.0
        %485 = vmatprep.subr.mxu0 0.0
        %486 = vmatpush2.msra.mxu0 0.0
        %487 = vmatprep.subr.mxu0 0.0
        %488 = vmatpush2.msra.mxu0 0.0
        %489 = vmatprep.subr.mxu0 0.0
        %490 = vmatpush2.msra.mxu0 0.0
        %491 = vmatprep.subr.mxu0 0.0
        %492 = vmatpush2.msra.mxu0 0.0
        %493 = vmatprep.subr.mxu0 0.0
        %494 = vmatpush2.msra.mxu0 0.0
        %495 = vmatprep.subr.mxu0 0.0
        %496 = vmatpush2.msra.mxu0 0.0
        %497 = vmatprep.subr.mxu0 0.0
        %498 = vmatpush2.msra.mxu0 0.0
        %499 = vmatprep.subr.mxu0 0.0
        %500 = vmatpush2.msra.mxu0 0.0
        %501 = vmatprep.mubr.f32.mxu0 0.0
        %502 = vmatmul.mubr.f32.gmra.mxu0 %v430
        %v503 = vpop.f32.mrf.mxu0
        %v504 = vadd.f32 %v435, %v503
        %v505 = vpop.f32.mrf.mxu0
        %506 = vdwg.mxu0
        %v507 = vadd.f32 %v504, %v425
        %508 = vadd.xlane.f32.xlu0 %v507
        %v509 = vpop.xlane.xlu0 %508
        %v510 = vrcp.pop 128.0
        %v511 = vmul.f32 %v509, %v510
        %v512 = vsub.f32 %v507, %v511
        %v513 = vmul.f32 %v512, %v512
        %514 = vadd.xlane.f32.xlu0 %v513
        %v515 = vpop.xlane.xlu0 %514
        %v516 = vmul.f32 %v515, %v510
        %v517 = vadd.f32 %v516, 1e-05
        %v518 = vrsqrt.pop %v517
        %v519 = vmul.f32 %v512, %v518
        %v521 = vlaneseq
        %v522 = vshrl.u32 %v521, 7
        %v523 = vsub.s32 0, %v522
        %v524 = vrot.slane %v345, %v523
        %v526 = vmul.f32 %v519, %v524
        %v528 = vlaneseq
        %v529 = vshrl.u32 %v528, 7
        %v530 = vsub.s32 0, %v529
        %v531 = vrot.slane %v346, %v530
        %v533 = vadd.f32 %v526, %v531
        %534 = vst [vmem:[%s322] sm:$0xff] %v533
        %s535 = sand.u32 %s185, 1
        %s536 = scalar_lea.sflag [#allocation4], %s535
        %s537 = sand.u32 %s185, 1
        %s538 = smul.addr %s537, 8
        %s539 = scalar_lea.vmem [#allocation8], %s538
        // Predicated region
        $region61: #{tpu_custom_call.1} parent=47 // pred_check
          %p540 = pneg %p195
        $region62: #{tpu_custom_call.1} parent=47 // pred_check_branch
          %542 = sbr.rel (%p540) target = $region64
        $region63: #{tpu_custom_call.1} parent=47 // pred_region
          %s544 = ssub.s32 128, 128
          %545 = vsyncadd %s536, %s544
          %s546 = smul.addr %s25, 128
          %s547 = scalar_lea.hbm %s7, %s546
          %s549 = sshll.u32 %s539, 4
          %s550 = int_to_ptr.vmem [resolvable:$true] %s549
          %552 = dma.vmem_to_hbm [thread:$0]  %s550, 128, %s547, %s536
        $region64: #{tpu_custom_call.1} parent=47 // pred_fallthru
          _
      $region48: #{tpu_custom_call.1} parent=5 // pred_fallthru
        _
      %p553 = scmp.le.s32.totalorder 2, %s20
      // Predicated region
      $region65: #{tpu_custom_call.1} parent=5 // pred_check
        %p554 = pneg %p553
      $region66: #{tpu_custom_call.1} parent=5 // pred_check_branch
        %556 = sbr.rel (%p554) target = $region68
      $region67: #{tpu_custom_call.1} parent=5 // pred_region
        %s557 = ssub.s32 %s20, 2
        // Predicated region
        $region69: #{tpu_custom_call.1} parent=67 // pred_check
          %p558 = pneg %p201
        $region70: #{tpu_custom_call.1} parent=67 // pred_check_branch
          %560 = sbr.rel (%p558) target = $region72
        $region71: #{tpu_custom_call.1} parent=67 // pred_region
          %s561 = sand.u32 %s186, 1
          %s562 = scalar_lea.sflag [#allocation4], %s561
          %s563 = sand.u32 %s186, 1
          %s564 = smul.addr %s563, 8
          %s565 = scalar_lea.vmem [#allocation8], %s564
          %566 = dma.done %s562, 128
        $region72: #{tpu_custom_call.1} parent=67 // pred_fallthru
          _
      $region68: #{tpu_custom_call.1} parent=5 // pred_fallthru
        _
    $region6: #{tpu_custom_call.1} parent=1 // loop_footer
      %s24 = sadd.s32 1, %s20
    $region7: #{tpu_custom_call.1} parent=1 // loop_footer_branch
      %19 = sbr.rel target = $region3
    $region8: #{tpu_custom_call.1} parent=1 // loop_exit
      _
    %567 = vsyncpa [#allocation3], 1
    %s568 = scalar_lea.sflag [#allocation3], 1
    %569 = vsyncpa %s568, 1
    %570 = vsyncpa [#allocation6], 1
    %571 = vsyncpa [#allocation4], 1
    %s572 = scalar_lea.sflag [#allocation4], 1
    %573 = vsyncpa %s572, 1

</llo_original>
